<compile_context>
chip_gen: v6e
topology: v6e:2x2x1
jax: 0.10.0
libtpu: 0.0.40
codegen_flags: <defaults>
</compile_context>

<pallas_src>
import functools

import jax
import jax.numpy as jnp
from jax.experimental import pallas as pl
from jax.experimental.pallas import tpu as pltpu


def _drop_path_kernel(scale_ref, x_ref, o_ref):
    # scale_ref: (tb, 1)  per-sample scale (0.0 or 1/keep_prob), f32
    # x_ref:     (tb, tf) tile of the flattened input
    # o_ref:     (tb, tf)
    #
    # Multiply in the input's native dtype: avoids materialising a full-tile
    # f32 temporary for bf16 inputs (halves vreg/VMEM pressure).  The tiny
    # (tb, 1) scale block is cast instead; for f32 inputs this is exact.
    # (For bf16 inputs 1/keep_prob rounds to bf16, ~0.4% relative error.)
    s = scale_ref[...].astype(x_ref.dtype)
    o_ref[...] = x_ref[...] * s


def _round_up(v, m):
    return -(-v // m) * m


def _choose_tiles(B, F, itemsize, block_budget):
    """Pick (tb, tf) so the *physically padded* data block fits block_budget."""
    # Sublane packing: a (rows, cols) block is padded to rows -> ceil(rows/pack)*pack.
    pack = max(1, 32 // itemsize)          # f32: 8, bf16: 16, int8: 32

    # Batch tile: full batch if small (full-dim blocks need no divisibility),
    # otherwise a fixed pack-aligned tile so tf stays wide even for huge B.
    tb = B if B <= 256 else 256            # 256 is a multiple of 8/16/32
    padded_tb = _round_up(tb, pack)

    # Feature tile: largest lane-dense (multiple-of-128) width whose padded
    # block stays inside the budget; keep at least 512 lanes when possible.
    tf_budget = max(128, (block_budget // (padded_tb * itemsize)) // 128 * 128)
    tf = F if F <= tf_budget else tf_budget

    padded_tf = _round_up(tf, 128)
    return tb, tf, padded_tb, padded_tf


def _drop_path_scale_pallas(x, scale, *, block_budget=8 * 1024 * 1024):
    """y[b, ...] = x[b, ...] * scale[b], computed with a Pallas TPU kernel.

    `block_budget` is the *padded* byte size of one data block.  The pipeline
    footprint is ~4x that (double-buffered input + output), i.e. ~32 MiB by
    default — well inside v5e/v6e's 128 MiB and v7x's 64 MiB physical VMEM.
    """
    B = x.shape[0]
    F = 1
    for d in x.shape[1:]:
        F *= d
    x2d = x.reshape(B, F)
    scale2d = scale.astype(jnp.float32).reshape(B, 1)

    itemsize = jnp.dtype(x.dtype).itemsize
    tb, tf, padded_tb, padded_tf = _choose_tiles(B, F, itemsize, block_budget)
    grid = (pl.cdiv(B, tb), pl.cdiv(F, tf))

    # Explicit, padding-aware scoped-VMEM limit (default limits are 16 MiB on
    # v5e / 32 MiB on v6e+v7x and are easy to trip once sublane padding is
    # counted).  2 buffers each for the x block, the out block, and the small
    # per-batch-tile scale block, plus headroom.
    data_block_bytes = padded_tb * padded_tf * itemsize
    scale_block_bytes = padded_tb * 128 * 4        # (tb,1) pads to 128 lanes, f32
    vmem_limit = 4 * data_block_bytes + 2 * scale_block_bytes + (2 << 20)
    vmem_limit = min(vmem_limit, 48 << 20)         # cap for v7x (64 MiB physical)

    cost = pl.CostEstimate(
        flops=B * F,
        transcendentals=0,
        bytes_accessed=2 * B * F * itemsize + B * 4,
    )

    out2d = pl.pallas_call(
        _drop_path_kernel,
        out_shape=jax.ShapeDtypeStruct((B, F), x.dtype),
        grid_spec=pltpu.PrefetchScalarGridSpec(
            num_scalar_prefetch=0,
            grid=grid,
            in_specs=[
                # per-sample scale: small (tb, 1) block indexed by the batch
                # grid coordinate (not a grid-invariant full-B lane-padded blob)
                pl.BlockSpec((tb, 1), lambda i, j: (i, 0)),
                pl.BlockSpec((tb, tf), lambda i, j: (i, j)),
            ],
            out_specs=pl.BlockSpec((tb, tf), lambda i, j: (i, j)),
        ),
        compiler_params=pltpu.CompilerParams(
            dimension_semantics=("parallel", "parallel"),
            vmem_limit_bytes=int(vmem_limit),
        ),
        cost_estimate=cost,
    )(scale2d, x2d)

    return out2d.reshape(x.shape)


def drop_path_pallas(x, drop_prob: float = 0.0, training: bool = False, *,
                     key=None):
    """Forward pass of DropPath, matching the PyTorch reference module."""
    if drop_prob == 0.0 or not training:
        return x  # identity, exactly like the PyTorch module (eval / p == 0)
    if key is None:
        raise ValueError("drop_path_pallas needs a PRNGKey when training "
                         "with drop_prob > 0")
    keep_prob = 1.0 - drop_prob
    B = x.shape[0]
    # torch: random_tensor = floor(keep_prob + U[0,1))  ->  Bernoulli(keep_prob)
    # TODO(synk): randomness comes from jax.random (same distribution; not
    # bit-identical to torch.rand).
    u = jax.random.uniform(key, (B,), dtype=jnp.float32)
    keep = jnp.floor(keep_prob + u)          # 0.0 or 1.0 per sample
    scale = keep / keep_prob                 # fold x.div(keep_prob) into the mask
    return _drop_path_scale_pallas(x, scale)


if __name__ == "__main__":
    key = jax.random.PRNGKey(0)
    kx, kmask = jax.random.split(key)

    B, C, H, W = 2, 4, 16, 16            # small ViT-style feature map; F = 1024
    drop_prob = 0.25
    x = jax.random.normal(kx, (B, C, H, W), dtype=jnp.float32)

    fwd = jax.jit(functools.partial(drop_path_pallas, drop_prob=drop_prob,
                                    training=True))
    out = fwd(x, key=kmask)
    out = jax.block_until_ready(out)

    # Reference: identical per-sample Bernoulli decisions, pure jnp broadcast.
    keep_prob = 1.0 - drop_prob
    u = jax.random.uniform(kmask, (B,), dtype=jnp.float32)
    ref_scale = jnp.floor(keep_prob + u) / keep_prob
    ref = x * ref_scale.reshape((B,) + (1,) * (x.ndim - 1))

    assert out.shape == x.shape
    assert jnp.allclose(out, ref, atol=1e-6, rtol=1e-6)

    # Eval mode / drop_prob == 0 are the identity, as in the PyTorch module.
    assert jnp.array_equal(drop_path_pallas(x, drop_prob, training=False), x)
    assert jnp.array_equal(drop_path_pallas(x, 0.0, training=True), x)

    print("KERNEL_OK")
</pallas_src>

<mosaic_0001>
module attributes {stable_mosaic.version = 11 : i64} {
  func.func @_drop_path_kernel(%arg0: i32, %arg1: i32, %arg2: memref<2x1xf32, #tpu.memory_space<vmem>>, %arg3: memref<2x1024xf32, #tpu.memory_space<vmem>>, %arg4: memref<2x1024xf32, #tpu.memory_space<vmem>>) attributes {dimension_semantics = [#tpu.dimension_semantics<parallel>, #tpu.dimension_semantics<parallel>], iteration_bounds = array<i64: 1, 1>, scalar_prefetch = 0 : i64, scratch_operands = 0 : i64, tpu.core_type = #tpu.core_type<tc>, window_params = [{transform_indices = @transform_0, window_bounds = array<i64: 2, 1>}, {transform_indices = @transform_1, window_bounds = array<i64: 2, 1024>}, {transform_indices = @transform_2, window_bounds = array<i64: 2, 1024>}]} {
    %c0 = arith.constant 0 : index
    %c0_0 = arith.constant 0 : index
    %0 = vector.load %arg2[%c0, %c0_0] : memref<2x1xf32, #tpu.memory_space<vmem>>, vector<2x1xf32>
    %c0_1 = arith.constant 0 : index
    %c0_2 = arith.constant 0 : index
    %1 = vector.load %arg3[%c0_1, %c0_2] : memref<2x1024xf32, #tpu.memory_space<vmem>>, vector<2x1024xf32>
    %2 = vector.broadcast %0 : vector<2x1xf32> to vector<2x1024xf32>
    %3 = arith.mulf %1, %2 : vector<2x1024xf32>
    %c0_3 = arith.constant 0 : index
    %c0_4 = arith.constant 0 : index
    %4 = vector.load %arg4[%c0_3, %c0_4] : memref<2x1024xf32, #tpu.memory_space<vmem>>, vector<2x1024xf32>
    tpu.vector_store %arg4[%c0_3, %c0_4], %3 {strides = array<i32>} : memref<2x1024xf32, #tpu.memory_space<vmem>>, vector<2x1024xf32>,
    return
  }
  func.func @transform_0(%arg0: i32, %arg1: i32) -> (i32, i32) {
    %c0_i32 = arith.constant 0 : i32
    %c0_i32_0 = arith.constant 0 : i32
    return %arg0, %c0_i32 : i32, i32
  }
  func.func @transform_1(%arg0: i32, %arg1: i32) -> (i32, i32) {
    %c0_i32 = arith.constant 0 : i32
    return %arg0, %arg1 : i32, i32
  }
  func.func @transform_2(%arg0: i32, %arg1: i32) -> (i32, i32) {
    %c0_i32 = arith.constant 0 : i32
    return %arg0, %arg1 : i32, i32
  }
}

</mosaic_0001>

<llo_original>
// kernel: drop_path_pallas.1
$region0: #{drop_path_pallas.1}
  #allocation0 [shape = 'u32[]', space=smem, size = 0x4, offset = 0x4, fixed_abs, tag = 'smem constant byte address 0x4 - core index']
  #allocation1 [shape = 'u32[144,128]{1,0:T(1,128)}', space=vmem, size = 0x12000, scoped, tag = 'internal scratch']
  %s0 = inlined_call_operand.vmem [shape: f32[2,1], index: 0, kind: input, shape index: {}]
  %s1 = inlined_call_operand.vmem [shape: f32[2,1024], index: 1, kind: input, shape index: {}]
  %s2 = inlined_call_operand.vmem [shape: f32[2,1024], index: 2, kind: output, shape index: {}]
  %s3 = sld [smem:[#allocation0]]
  $region18: #{drop_path_pallas.1} parent=0
    _
  %s5 = ssub.s32 1, %s3
  %s6 = scalar_select 0, %s5, %s3
  // Predicated region
  $region2: #{drop_path_pallas.1} parent=0 // pred_check
    _
  $region3: #{drop_path_pallas.1} parent=0 // pred_check_branch
    %8 = sbr.rel (0) target = $region5
  $region4: #{drop_path_pallas.1} parent=0 // pred_region
    _
  $region5: #{drop_path_pallas.1} parent=0 // pred_fallthru
    _
  // Predicated region
  $region6: #{drop_path_pallas.1} parent=0 // pred_check
    _
  $region7: #{drop_path_pallas.1} parent=0 // pred_check_branch
    %10 = sbr.rel (0) target = $region9
  $region8: #{drop_path_pallas.1} parent=0 // pred_region
    _
  $region9: #{drop_path_pallas.1} parent=0 // pred_fallthru
    _
  %v11 = vld [vmem:[%s0] sm:$0x3]
  %v12 = vld [vmem:[%s1] sm:$0xff]
  %v13 = vld [vmem:[%s1 + $0x8] sm:$0xff]
  %15 = vset.pattern.permute.xlu0 0
  %16 = vperm.xlu0 %15, %v11
  %v17 = vpop.permute.xlu0 %16
  %v19 = vunpack.c.l.s4 269488144
  %v20 = vunpack.c.0.s8 %v19
  %v21 = vlaneseq
  %v22 = vshrl.u32 %v21, 7
  %v23 = vsub.s32 %v20, %v22
  %v24 = vrot.slane %v17, %v23
  %v26 = vmul.f32 %v12, %v24
  %v27 = vmul.f32 %v13, %v24
  %28 = vst [vmem:[%s2] sm:$0xff] %v26
  %29 = vst [vmem:[%s2 + $0x8] sm:$0xff] %v27
  // Predicated region
  $region10: #{drop_path_pallas.1} parent=0 // pred_check
    _
  $region11: #{drop_path_pallas.1} parent=0 // pred_check_branch
    %31 = sbr.rel (0) target = $region13
  $region12: #{drop_path_pallas.1} parent=0 // pred_region
    _
  $region13: #{drop_path_pallas.1} parent=0 // pred_fallthru
    _
  // Predicated region
  $region14: #{drop_path_pallas.1} parent=0 // pred_check
    _
  $region15: #{drop_path_pallas.1} parent=0 // pred_check_branch
    %33 = sbr.rel (0) target = $region17
  $region16: #{drop_path_pallas.1} parent=0 // pred_region
    _
  $region17: #{drop_path_pallas.1} parent=0 // pred_fallthru
    _

</llo_original>
